<compile_context>
chip_gen: v7x
topology: tpu7x:2x2x1
jax: 0.10.0
libtpu: 0.0.40
codegen_flags: <defaults>
</compile_context>

<pallas_src>
import functools

import jax
import jax.numpy as jnp
import numpy as np
from jax.experimental import pallas as pl
from jax.experimental.pallas import tpu as pltpu


def _score_kernel(v_ref, c_ref, table_ref, out_ref):
    # v_ref:     (1, D_r)  bf16  fused projection  W_r^T u      (VMEM, resident)
    # c_ref:     (1,)      f32   fused bias        b_r . u      (SMEM scalar)
    # table_ref: (D_r, TR) bf16  transposed recipe-embedding tile (lane-dense)
    # out_ref:   (1, TR)   f32   scores for this tile of recipes
    #
    # Single MXU matvec with f32 accumulation: no tile-sized VMEM temp, no
    # cross-sublane reduce; the kernel stays pure HBM-bandwidth-bound.
    out_ref[...] = (
        jnp.dot(v_ref[...], table_ref[...], preferred_element_type=jnp.float32)
        + c_ref[0]
    )


def prepare_recipe_table(recipe_embed):
    """Deploy-time prep (analogue of RecommenderDeployWrapper.__init__):
    store the recipe embedding table transposed [D_r, R] in bfloat16 so the
    kernel streams it lane-dense at half the bytes. Done once, not per call."""
    return jnp.asarray(recipe_embed).T.astype(jnp.bfloat16)


def _pick_tile_r(num_recipes, max_tile):
    """Lane tile over recipes.  If the whole table fits in one tile, take it
    (single grid step); otherwise the largest multiple of 128 <= max_tile.
    No tile-halving to force extra grid steps: on 1-TC chips it only doubles
    per-step overhead, and big tables naturally produce many steps anyway."""
    if num_recipes <= max_tile:
        return num_recipes
    return max(128, (max_tile // 128) * 128)


@functools.partial(jax.jit, static_argnames=("max_tile_r",))
def recommender_scores(user_id, user_embed, recipe_table_t,
                       w_user, b_user, w_recipe, b_recipe,
                       *, max_tile_r=65536):
    """Preference scores for all recipes for `user_id`.

    Matches the PyTorch forward:  ((W_u e_u + b_u) * (E_r W_r^T + b_r)).sum(-1)
    computed as  E_r @ (W_r^T u) + b_r . u  with the table streamed in bf16.
    """
    d_r, num_recipes = recipe_table_t.shape

    # --- tiny per-user glue (all O(H*D) work on length-32 vectors) ---
    # TODO(synk): the serving path could batch users (v -> (B, D_r)) to
    # amortize the table stream over B users; the PyTorch forward is
    # single-user, so we keep B=1 here.
    u = user_embed[user_id] @ w_user.T + b_user                      # [H] f32
    v = (u @ w_recipe).reshape(1, d_r).astype(jnp.bfloat16)         # [1, D_r]
    c = jnp.dot(u, b_recipe).reshape(1).astype(jnp.float32)         # [1]

    tile_r = _pick_tile_r(num_recipes, max_tile_r)
    n_steps = pl.cdiv(num_recipes, tile_r)                           # ragged-safe

    # Triple-buffer the streamed table tiles once there is something to
    # pipeline; max tile (32 x 65536 bf16 = 4 MiB) * 3 buffers = 12 MiB,
    # comfortably under the 32 MiB scoped-VMEM limit requested below on
    # every generation (v5e/v6e/v7x).
    if n_steps >= 3:
        table_spec = pl.BlockSpec((d_r, tile_r), lambda i: (0, i),
                                  pipeline_mode=pl.Buffered(3))
    else:
        table_spec = pl.BlockSpec((d_r, tile_r), lambda i: (0, i))

    cost = pl.CostEstimate(
        flops=2 * d_r * num_recipes,
        transcendentals=0,
        bytes_accessed=2 * d_r * num_recipes + 4 * num_recipes + 2 * d_r + 4,
    )

    out = pl.pallas_call(
        _score_kernel,
        out_shape=jax.ShapeDtypeStruct((1, num_recipes), jnp.float32),
        grid_spec=pltpu.PrefetchScalarGridSpec(
            num_scalar_prefetch=0,
            grid=(n_steps,),
            in_specs=[
                pl.BlockSpec((1, d_r), lambda i: (0, 0)),            # v (resident)
                pl.BlockSpec(memory_space=pltpu.MemorySpace.SMEM),   # c (SMEM scalar)
                table_spec,                                          # table tile
            ],
            out_specs=pl.BlockSpec((1, tile_r), lambda i: (0, i)),
        ),
        compiler_params=pltpu.CompilerParams(
            dimension_semantics=("parallel",),
            vmem_limit_bytes=32 << 20,
        ),
        cost_estimate=cost,
    )(v, c, recipe_table_t)
    return out.reshape(num_recipes)


if __name__ == "__main__":
    # Small synthetic shapes consistent with the module.
    NUM_USERS = 8
    NUM_RECIPES = 1024
    USER_DIM = 16
    RECIPE_DIM = 32
    HIDDEN = 32

    key = jax.random.PRNGKey(0)
    k1, k2, k3, k4, k5, k6 = jax.random.split(key, 6)

    user_embed = jax.random.normal(k1, (NUM_USERS, USER_DIM), jnp.float32)
    recipe_embed = jax.random.normal(k2, (NUM_RECIPES, RECIPE_DIM), jnp.float32)
    # PyTorch nn.Linear(in, out): weight [out, in], bias [out]
    w_user = jax.random.normal(k3, (HIDDEN, USER_DIM), jnp.float32) * 0.1
    b_user = jax.random.normal(k4, (HIDDEN,), jnp.float32) * 0.1
    w_recipe = jax.random.normal(k5, (HIDDEN, RECIPE_DIM), jnp.float32) * 0.1
    b_recipe = jax.random.normal(k6, (HIDDEN,), jnp.float32) * 0.1

    user_id = jnp.int32(3)

    # One-time deploy prep: bf16, transposed [D_r, R].
    recipe_table_t = prepare_recipe_table(recipe_embed)

    # Default path: whole table fits in one tile (single grid step).
    scores = recommender_scores(user_id, user_embed, recipe_table_t,
                                w_user, b_user, w_recipe, b_recipe)
    scores = jax.block_until_ready(scores)

    # Forced multi-tile path: 256-wide tiles -> 4 grid steps, exercises the
    # triple-buffered streaming pipeline and the tiled output stores.
    scores_tiled = recommender_scores(user_id, user_embed, recipe_table_t,
                                      w_user, b_user, w_recipe, b_recipe,
                                      max_tile_r=256)
    scores_tiled = jax.block_until_ready(scores_tiled)

    # --- References ---
    u_f32 = user_embed[3] @ w_user.T + b_user                        # [H]
    # (1) Exact mirror of what the kernel computes (same bf16 table / bf16 v).
    v_bf = (u_f32 @ w_recipe).astype(jnp.bfloat16).astype(jnp.float32)   # [D_r]
    c_f32 = jnp.dot(u_f32, b_recipe)
    table_f32 = recipe_table_t.astype(jnp.float32)                   # [D_r, R]
    mirror = v_bf @ table_f32 + c_f32                                # [R]
    # (2) Full-f32 PyTorch-semantics reference (bf16 storage is a deliberate
    #     deploy-time precision trade -> looser tolerance).
    r_full = recipe_embed @ w_recipe.T + b_recipe                    # [R, H]
    ref_full = r_full @ u_f32                                        # [R]

    np.testing.assert_allclose(np.asarray(scores), np.asarray(mirror),
                               rtol=1e-4, atol=1e-4)
    np.testing.assert_allclose(np.asarray(scores_tiled), np.asarray(mirror),
                               rtol=1e-4, atol=1e-4)
    np.testing.assert_allclose(np.asarray(scores), np.asarray(ref_full),
                               rtol=5e-2, atol=5e-2)
    np.testing.assert_allclose(np.asarray(scores), np.asarray(scores_tiled),
                               rtol=1e-5, atol=1e-5)
    print("KERNEL_OK")
</pallas_src>

<mosaic_0001>
module attributes {stable_mosaic.version = 11 : i64} {
  func.func @_score_kernel(%arg0: i32, %arg1: memref<1x32xbf16, #tpu.memory_space<vmem>>, %arg2: memref<1xf32, #tpu.memory_space<smem>>, %arg3: memref<32x1024xbf16, #tpu.memory_space<vmem>>, %arg4: memref<1x1024xf32, #tpu.memory_space<vmem>>) attributes {dimension_semantics = [#tpu.dimension_semantics<parallel>], iteration_bounds = array<i64: 1>, scalar_prefetch = 0 : i64, scratch_operands = 0 : i64, tpu.core_type = #tpu.core_type<tc>, window_params = [{pipeline_mode = #tpu.pipeline_mode<synchronous>, transform_indices = @transform_0, window_bounds = array<i64: 1, 32>}, {transform_indices = @transform_1, window_bounds = array<i64: 1>}, {transform_indices = @transform_2, window_bounds = array<i64: 32, 1024>}, {transform_indices = @transform_3, window_bounds = array<i64: 1, 1024>}]} {
    %c0 = arith.constant 0 : index
    %c0_0 = arith.constant 0 : index
    %0 = vector.load %arg1[%c0, %c0_0] : memref<1x32xbf16, #tpu.memory_space<vmem>>, vector<1x32xbf16>
    %c0_1 = arith.constant 0 : index
    %c0_2 = arith.constant 0 : index
    %1 = vector.load %arg3[%c0_1, %c0_2] : memref<32x1024xbf16, #tpu.memory_space<vmem>>, vector<32x1024xbf16>
    %cst = arith.constant dense<0.000000e+00> : vector<1x1024xf32>
    %2 = tpu.matmul %0, %1, %cst {dimension_numbers = #tpu.dot_dimension_numbers<[1], [0], [0], [1], [0, 0, 1, 1], [], []>} : vector<1x32xbf16>, vector<32x1024xbf16>, vector<1x1024xf32> -> vector<1x1024xf32>
    %c0_3 = arith.constant 0 : index
    %3 = memref.load %arg2[%c0_3] : memref<1xf32, #tpu.memory_space<smem>>
    %4 = vector.broadcast %3 : f32 to vector<1x1024xf32>
    %5 = arith.addf %2, %4 : vector<1x1024xf32>
    %c0_4 = arith.constant 0 : index
    %c0_5 = arith.constant 0 : index
    %6 = vector.load %arg4[%c0_4, %c0_5] : memref<1x1024xf32, #tpu.memory_space<vmem>>, vector<1x1024xf32>
    tpu.vector_store %arg4[%c0_4, %c0_5], %5 {strides = array<i32>} : memref<1x1024xf32, #tpu.memory_space<vmem>>, vector<1x1024xf32>,
    return
  }
  func.func @transform_0(%arg0: i32) -> (i32, i32) {
    %c0_i32 = arith.constant 0 : i32
    %c0_i32_0 = arith.constant 0 : i32
    %c0_i32_1 = arith.constant 0 : i32
    return %c0_i32, %c0_i32_0 : i32, i32
  }
  func.func @transform_1(%arg0: i32) -> i32 {
    %c0_i32 = arith.constant 0 : i32
    %c0_i32_0 = arith.constant 0 : i32
    return %c0_i32 : i32
  }
  func.func @transform_2(%arg0: i32) -> (i32, i32) {
    %c0_i32 = arith.constant 0 : i32
    %c0_i32_0 = arith.constant 0 : i32
    return %c0_i32, %arg0 : i32, i32
  }
  func.func @transform_3(%arg0: i32) -> (i32, i32) {
    %c0_i32 = arith.constant 0 : i32
    %c0_i32_0 = arith.constant 0 : i32
    return %c0_i32, %arg0 : i32, i32
  }
}

</mosaic_0001>

<llo_original>
// kernel: recommender_scores.1
$region0: #{recommender_scores.1}
  #allocation0 [shape = 'u32[]', space=smem, size = 0x4, offset = 0x4, fixed_abs, tag = 'smem constant byte address 0x4 - core index']
  #allocation1 [shape = 'u32[144,128]{1,0:T(1,128)}', space=vmem, size = 0x12000, scoped, tag = 'internal scratch']
  #allocation2 [shape = 'f32[1]{0:T(128)S(6)}', space=smem, size = 0x200, scoped, tag = 'scoped memory for recommender_scores.1']
  %s0 = inlined_call_operand.vmem [shape: bf16[1,32], index: 0, kind: input, shape index: {}]
  %s1 = inlined_call_operand.<no memory space> [shape: f32[1], index: 1, kind: input, shape index: {}]
  %s2 = inlined_call_operand.hbm [shape: bf16[32,1024], index: 2, kind: input, shape index: {}]
  %s3 = inlined_call_operand.hbm [shape: f32[1,1024], index: 3, kind: output, shape index: {}]
  %s4 = sld [smem:[#allocation0]]
  $region26: #{recommender_scores.1} parent=0
    _
  %s6 = ssub.s32 1, %s4
  %s7 = scalar_select 0, %s6, %s4
  %8 = sst [smem:[#allocation2]] %s1
  $region1: #{recommender_scores.1} parent=0
    #allocation3 [shape = 'u8[65536]{0}', space=vmem, size = 0x10000, scoped, tag = 'input window, operand 2, single buffered']
    #allocation4 [shape = 's32[1]{0}', space=sflag, size = 0x4, scoped, tag = 'scoped memory for recommender_scores.1']
    #allocation5 [shape = 's32[1]{0}', space=sflag, size = 0x4, scoped, tag = 'scoped memory for recommender_scores.1']
    #allocation6 [shape = 'u8[4096]{0}', space=vmem, size = 0x1000, scoped, tag = 'output window, operand 0, single buffered']
    %9 = vsyncpa [#allocation4], 0
    %10 = vsyncpa [#allocation5], 0
    // Predicated region
    $region2: #{recommender_scores.1} parent=1 // pred_check
      _
    $region3: #{recommender_scores.1} parent=1 // pred_check_branch
      %12 = sbr.rel (0) target = $region5
    $region4: #{recommender_scores.1} parent=1 // pred_region
      _
    $region5: #{recommender_scores.1} parent=1 // pred_fallthru
      _
    // Predicated region
    $region6: #{recommender_scores.1} parent=1 // pred_check
      _
    $region7: #{recommender_scores.1} parent=1 // pred_check_branch
      %14 = sbr.rel (0) target = $region9
    $region8: #{recommender_scores.1} parent=1 // pred_region
      _
    $region9: #{recommender_scores.1} parent=1 // pred_fallthru
      _
    // Predicated region
    $region10: #{recommender_scores.1} parent=1 // pred_check
      _
    $region11: #{recommender_scores.1} parent=1 // pred_check_branch
      %16 = sbr.rel (0) target = $region13
    $region12: #{recommender_scores.1} parent=1 // pred_region
      %s18 = ssub.s32 2048, 2048
      %19 = vsyncadd [#allocation4], %s18
      %s20 = sshll.u32 [#allocation3], 4
      %s21 = int_to_ptr.vmem [resolvable:$true] %s20
      %26 = dma.hbm_to_vmem [thread:$0]  %s2, 2048, %s21, [#allocation4], 512, 512, 32
    $region13: #{recommender_scores.1} parent=1 // pred_fallthru
      _
    // Predicated region
    $region14: #{recommender_scores.1} parent=1 // pred_check
      _
    $region15: #{recommender_scores.1} parent=1 // pred_check_branch
      %28 = sbr.rel (0) target = $region17
    $region16: #{recommender_scores.1} parent=1 // pred_region
      %29 = dma.done [#allocation4], 2048
    $region17: #{recommender_scores.1} parent=1 // pred_fallthru
      _
    %v31 = vld [vmem:[%s0] sm:$0x1]
    %v32 = vld [vmem:[#allocation3] sm:$0xff]
    %v33 = vld [vmem:[#allocation3 + $0x8] sm:$0xff]
    %v34 = vld [vmem:[#allocation3 + $0x10] sm:$0xff]
    %v35 = vld [vmem:[#allocation3 + $0x18] sm:$0xff]
    %v36 = vld [vmem:[#allocation3 + $0x20] sm:$0xff]
    %v37 = vld [vmem:[#allocation3 + $0x28] sm:$0xff]
    %v38 = vld [vmem:[#allocation3 + $0x30] sm:$0xff]
    %v39 = vld [vmem:[#allocation3 + $0x38] sm:$0xff]
    %v40 = vld [vmem:[#allocation3 + $0x40] sm:$0xff]
    %v41 = vld [vmem:[#allocation3 + $0x48] sm:$0xff]
    %v42 = vld [vmem:[#allocation3 + $0x50] sm:$0xff]
    %v43 = vld [vmem:[#allocation3 + $0x58] sm:$0xff]
    %v44 = vld [vmem:[#allocation3 + $0x60] sm:$0xff]
    %v45 = vld [vmem:[#allocation3 + $0x68] sm:$0xff]
    %v46 = vld [vmem:[#allocation3 + $0x70] sm:$0xff]
    %v47 = vld [vmem:[#allocation3 + $0x78] sm:$0xff]
    %s48 = sld [smem:[#allocation2]]
    %v49 = vstv %s48
    %v66 = vunpack.c.l.b16 %v32
    %v67 = vunpack.c.h.b16 %v32
    %v68 = vunpack.c.l.b16 %v33
    %v69 = vunpack.c.h.b16 %v33
    %v70 = vunpack.c.l.b16 %v34
    %v71 = vunpack.c.h.b16 %v34
    %v72 = vunpack.c.l.b16 %v35
    %v73 = vunpack.c.h.b16 %v35
    %v74 = vunpack.c.l.b16 %v36
    %v75 = vunpack.c.h.b16 %v36
    %v76 = vunpack.c.l.b16 %v37
    %v77 = vunpack.c.h.b16 %v37
    %v78 = vunpack.c.l.b16 %v38
    %v79 = vunpack.c.h.b16 %v38
    %v80 = vunpack.c.l.b16 %v39
    %v81 = vunpack.c.h.b16 %v39
    %v82 = vunpack.c.l.b16 %v40
    %v83 = vunpack.c.h.b16 %v40
    %v84 = vunpack.c.l.b16 %v41
    %v85 = vunpack.c.h.b16 %v41
    %v86 = vunpack.c.l.b16 %v42
    %v87 = vunpack.c.h.b16 %v42
    %v88 = vunpack.c.l.b16 %v43
    %v89 = vunpack.c.h.b16 %v43
    %v90 = vunpack.c.l.b16 %v44
    %v91 = vunpack.c.h.b16 %v44
    %v92 = vunpack.c.l.b16 %v45
    %v93 = vunpack.c.h.b16 %v45
    %v94 = vunpack.c.l.b16 %v46
    %v95 = vunpack.c.h.b16 %v46
    %v96 = vunpack.c.l.b16 %v47
    %v97 = vunpack.c.h.b16 %v47
    %v98 = vpack.c.b16 %v74, %v66
    %v99 = vpack.c.b16 %v75, %v67
    %v100 = vpack.c.b16 %v76, %v68
    %v101 = vpack.c.b16 %v77, %v69
    %v102 = vpack.c.b16 %v78, %v70
    %v103 = vpack.c.b16 %v79, %v71
    %v104 = vpack.c.b16 %v80, %v72
    %v105 = vpack.c.b16 %v81, %v73
    %v106 = vpack.c.b16 %v90, %v82
    %v107 = vpack.c.b16 %v91, %v83
    %v108 = vpack.c.b16 %v92, %v84
    %v109 = vpack.c.b16 %v93, %v85
    %v110 = vpack.c.b16 %v94, %v86
    %v111 = vpack.c.b16 %v95, %v87
    %v112 = vpack.c.b16 %v96, %v88
    %v113 = vpack.c.b16 %v97, %v89
    %vm130 = vcmask 261120
    %v132 = vsel %vm130, %v31, 0
    %134 = vmatprep.subr.bf16.mxu0 %v99
    %135 = vmatpush1.bf16.msra.mxu0 %v98
    %136 = vmatprep.subr.bf16.mxu0 %v107
    %137 = vmatpush1.bf16.msra.mxu0 %v106
    %138 = vmatprep.subr.bf16.mxu0 0
    %139 = vmatpush1.bf16.msra.mxu0 0
    %140 = vmatprep.subr.bf16.mxu0 0
    %141 = vmatpush1.bf16.msra.mxu0 0
    %142 = vmatprep.subr.bf16.mxu0 0
    %143 = vmatpush1.bf16.msra.mxu0 0
    %144 = vmatprep.subr.bf16.mxu0 0
    %145 = vmatpush1.bf16.msra.mxu0 0
    %146 = vmatprep.subr.bf16.mxu0 0
    %147 = vmatpush1.bf16.msra.mxu0 0
    %148 = vmatprep.subr.bf16.mxu0 0
    %149 = vmatpush1.bf16.msra.mxu0 0
    %150 = vmatprep.subr.bf16.mxu0 0
    %151 = vmatpush1.bf16.msra.mxu0 0
    %152 = vmatprep.subr.bf16.mxu0 0
    %153 = vmatpush1.bf16.msra.mxu0 0
    %154 = vmatprep.subr.bf16.mxu0 0
    %155 = vmatpush1.bf16.msra.mxu0 0
    %156 = vmatprep.subr.bf16.mxu0 0
    %157 = vmatpush1.bf16.msra.mxu0 0
    %158 = vmatprep.subr.bf16.mxu0 0
    %159 = vmatpush1.bf16.msra.mxu0 0
    %160 = vmatprep.subr.bf16.mxu0 0
    %161 = vmatpush1.bf16.msra.mxu0 0
    %162 = vmatprep.subr.bf16.mxu0 0
    %163 = vmatpush1.bf16.msra.mxu0 0
    %164 = vmatprep.subr.bf16.mxu0 0
    %165 = vmatpush1.bf16.msra.mxu0 0
    %166 = vmatprep.mubr.bf16.mxu0 0
    %167 = vmatmul.mubr.bf16.gmra.mrb[0].mxu0 %v132
    %v168 = vpop.f32.mrb[0].mxu0
    %v169 = vadd.f32 %v49, %v168
    %v170 = vpop.f32.mrb[0].mxu0
    %v171 = vadd.f32 %v49, %v170
    %v172 = vpop.f32.mrb[0].mxu0
    %v173 = vpop.f32.mrb[0].mxu0
    %174 = vdwg.mxu0
    %175 = vmatprep.subr.bf16.mxu0 %v101
    %176 = vmatpush1.bf16.msra.mxu0 %v100
    %177 = vmatprep.subr.bf16.mxu0 %v109
    %178 = vmatpush1.bf16.msra.mxu0 %v108
    %179 = vmatprep.subr.bf16.mxu0 0
    %180 = vmatpush1.bf16.msra.mxu0 0
    %181 = vmatprep.subr.bf16.mxu0 0
    %182 = vmatpush1.bf16.msra.mxu0 0
    %183 = vmatprep.subr.bf16.mxu0 0
    %184 = vmatpush1.bf16.msra.mxu0 0
    %185 = vmatprep.subr.bf16.mxu0 0
    %186 = vmatpush1.bf16.msra.mxu0 0
    %187 = vmatprep.subr.bf16.mxu0 0
    %188 = vmatpush1.bf16.msra.mxu0 0
    %189 = vmatprep.subr.bf16.mxu0 0
    %190 = vmatpush1.bf16.msra.mxu0 0
    %191 = vmatprep.subr.bf16.mxu0 0
    %192 = vmatpush1.bf16.msra.mxu0 0
    %193 = vmatprep.subr.bf16.mxu0 0
    %194 = vmatpush1.bf16.msra.mxu0 0
    %195 = vmatprep.subr.bf16.mxu0 0
    %196 = vmatpush1.bf16.msra.mxu0 0
    %197 = vmatprep.subr.bf16.mxu0 0
    %198 = vmatpush1.bf16.msra.mxu0 0
    %199 = vmatprep.subr.bf16.mxu0 0
    %200 = vmatpush1.bf16.msra.mxu0 0
    %201 = vmatprep.subr.bf16.mxu0 0
    %202 = vmatpush1.bf16.msra.mxu0 0
    %203 = vmatprep.subr.bf16.mxu0 0
    %204 = vmatpush1.bf16.msra.mxu0 0
    %205 = vmatprep.subr.bf16.mxu0 0
    %206 = vmatpush1.bf16.msra.mxu0 0
    %207 = vmatprep.mubr.bf16.mxu0 0
    %208 = vmatmul.mubr.bf16.gmra.mrb[0].mxu0 %v132
    %v209 = vpop.f32.mrb[0].mxu0
    %v210 = vadd.f32 %v49, %v209
    %v211 = vpop.f32.mrb[0].mxu0
    %v212 = vadd.f32 %v49, %v211
    %v213 = vpop.f32.mrb[0].mxu0
    %v214 = vpop.f32.mrb[0].mxu0
    %215 = vdwg.mxu0
    %216 = vmatprep.subr.bf16.mxu0 %v103
    %217 = vmatpush1.bf16.msra.mxu0 %v102
    %218 = vmatprep.subr.bf16.mxu0 %v111
    %219 = vmatpush1.bf16.msra.mxu0 %v110
    %220 = vmatprep.subr.bf16.mxu0 0
    %221 = vmatpush1.bf16.msra.mxu0 0
    %222 = vmatprep.subr.bf16.mxu0 0
    %223 = vmatpush1.bf16.msra.mxu0 0
    %224 = vmatprep.subr.bf16.mxu0 0
    %225 = vmatpush1.bf16.msra.mxu0 0
    %226 = vmatprep.subr.bf16.mxu0 0
    %227 = vmatpush1.bf16.msra.mxu0 0
    %228 = vmatprep.subr.bf16.mxu0 0
    %229 = vmatpush1.bf16.msra.mxu0 0
    %230 = vmatprep.subr.bf16.mxu0 0
    %231 = vmatpush1.bf16.msra.mxu0 0
    %232 = vmatprep.subr.bf16.mxu0 0
    %233 = vmatpush1.bf16.msra.mxu0 0
    %234 = vmatprep.subr.bf16.mxu0 0
    %235 = vmatpush1.bf16.msra.mxu0 0
    %236 = vmatprep.subr.bf16.mxu0 0
    %237 = vmatpush1.bf16.msra.mxu0 0
    %238 = vmatprep.subr.bf16.mxu0 0
    %239 = vmatpush1.bf16.msra.mxu0 0
    %240 = vmatprep.subr.bf16.mxu0 0
    %241 = vmatpush1.bf16.msra.mxu0 0
    %242 = vmatprep.subr.bf16.mxu0 0
    %243 = vmatpush1.bf16.msra.mxu0 0
    %244 = vmatprep.subr.bf16.mxu0 0
    %245 = vmatpush1.bf16.msra.mxu0 0
    %246 = vmatprep.subr.bf16.mxu0 0
    %247 = vmatpush1.bf16.msra.mxu0 0
    %248 = vmatprep.mubr.bf16.mxu0 0
    %249 = vmatmul.mubr.bf16.gmra.mrb[0].mxu0 %v132
    %v250 = vpop.f32.mrb[0].mxu0
    %v251 = vadd.f32 %v49, %v250
    %v252 = vpop.f32.mrb[0].mxu0
    %v253 = vadd.f32 %v49, %v252
    %v254 = vpop.f32.mrb[0].mxu0
    %v255 = vpop.f32.mrb[0].mxu0
    %256 = vdwg.mxu0
    %257 = vmatprep.subr.bf16.mxu0 %v105
    %258 = vmatpush1.bf16.msra.mxu0 %v104
    %259 = vmatprep.subr.bf16.mxu0 %v113
    %260 = vmatpush1.bf16.msra.mxu0 %v112
    %261 = vmatprep.subr.bf16.mxu0 0
    %262 = vmatpush1.bf16.msra.mxu0 0
    %263 = vmatprep.subr.bf16.mxu0 0
    %264 = vmatpush1.bf16.msra.mxu0 0
    %265 = vmatprep.subr.bf16.mxu0 0
    %266 = vmatpush1.bf16.msra.mxu0 0
    %267 = vmatprep.subr.bf16.mxu0 0
    %268 = vmatpush1.bf16.msra.mxu0 0
    %269 = vmatprep.subr.bf16.mxu0 0
    %270 = vmatpush1.bf16.msra.mxu0 0
    %271 = vmatprep.subr.bf16.mxu0 0
    %272 = vmatpush1.bf16.msra.mxu0 0
    %273 = vmatprep.subr.bf16.mxu0 0
    %274 = vmatpush1.bf16.msra.mxu0 0
    %275 = vmatprep.subr.bf16.mxu0 0
    %276 = vmatpush1.bf16.msra.mxu0 0
    %277 = vmatprep.subr.bf16.mxu0 0
    %278 = vmatpush1.bf16.msra.mxu0 0
    %279 = vmatprep.subr.bf16.mxu0 0
    %280 = vmatpush1.bf16.msra.mxu0 0
    %281 = vmatprep.subr.bf16.mxu0 0
    %282 = vmatpush1.bf16.msra.mxu0 0
    %283 = vmatprep.subr.bf16.mxu0 0
    %284 = vmatpush1.bf16.msra.mxu0 0
    %285 = vmatprep.subr.bf16.mxu0 0
    %286 = vmatpush1.bf16.msra.mxu0 0
    %287 = vmatprep.subr.bf16.mxu0 0
    %288 = vmatpush1.bf16.msra.mxu0 0
    %289 = vmatprep.mubr.bf16.mxu0 0
    %290 = vmatmul.mubr.bf16.gmra.mrb[0].mxu0 %v132
    %v291 = vpop.f32.mrb[0].mxu0
    %v292 = vadd.f32 %v49, %v291
    %v293 = vpop.f32.mrb[0].mxu0
    %v294 = vadd.f32 %v49, %v293
    %v295 = vpop.f32.mrb[0].mxu0
    %v296 = vpop.f32.mrb[0].mxu0
    %297 = vdwg.mxu0
    %v306 = vcombine.low %v169, %v171
    %v307 = vcombine.low %v210, %v212
    %v308 = vcombine.low %v251, %v253
    %v309 = vcombine.low %v292, %v294
    %v311 = vunpack.c.l.s4 1966171168
    %v312 = vunpack.c.0.s8 %v311
    %v313 = vlaneseq
    %v314 = vshrl.u32 %v313, 7
    %v315 = vsub.s32 %v312, %v314
    %v316 = vrot.slane %v306, %v315
    %v318 = vunpack.c.l.s4 1966171168
    %v319 = vunpack.c.0.s8 %v318
    %v320 = vlaneseq
    %v321 = vshrl.u32 %v320, 7
    %v322 = vsub.s32 %v319, %v321
    %v323 = vrot.slane %v307, %v322
    %v325 = vunpack.c.l.s4 1966171168
    %v326 = vunpack.c.0.s8 %v325
    %v327 = vlaneseq
    %v328 = vshrl.u32 %v327, 7
    %v329 = vsub.s32 %v326, %v328
    %v330 = vrot.slane %v308, %v329
    %v332 = vunpack.c.l.s4 1966171168
    %v333 = vunpack.c.0.s8 %v332
    %v334 = vlaneseq
    %v335 = vshrl.u32 %v334, 7
    %v336 = vsub.s32 %v333, %v335
    %v337 = vrot.slane %v309, %v336
    %v338 = vcombine.low %v316, %v323
    %v339 = vcombine.low %v330, %v337
    %v341 = vunpack.c.l.s4 1966171168
    %v342 = vunpack.c.0.s8 %v341
    %v343 = vlaneseq
    %v344 = vshrl.u32 %v343, 7
    %v345 = vsub.s32 %v342, %v344
    %v346 = vrot.slane %v338, %v345
    %v348 = vunpack.c.l.s4 1966171168
    %v349 = vunpack.c.0.s8 %v348
    %v350 = vlaneseq
    %v351 = vshrl.u32 %v350, 7
    %v352 = vsub.s32 %v349, %v351
    %v353 = vrot.slane %v339, %v352
    %v354 = vcombine.low %v346, %v353
    %356 = vst [vmem:[#allocation6] sm:$0xff] %v354
    // Predicated region
    $region18: #{recommender_scores.1} parent=1 // pred_check
      _
    $region19: #{recommender_scores.1} parent=1 // pred_check_branch
      %358 = sbr.rel (0) target = $region21
    $region20: #{recommender_scores.1} parent=1 // pred_region
      %s360 = ssub.s32 128, 128
      %361 = vsyncadd [#allocation5], %s360
      %s363 = sshll.u32 [#allocation6], 4
      %s364 = int_to_ptr.vmem [resolvable:$true] %s363
      %366 = dma.vmem_to_hbm [thread:$0]  %s364, 128, %s3, [#allocation5]
    $region21: #{recommender_scores.1} parent=1 // pred_fallthru
      _
    // Predicated region
    $region22: #{recommender_scores.1} parent=1 // pred_check
      _
    $region23: #{recommender_scores.1} parent=1 // pred_check_branch
      %368 = sbr.rel (0) target = $region25
    $region24: #{recommender_scores.1} parent=1 // pred_region
      %369 = dma.done [#allocation5], 128
    $region25: #{recommender_scores.1} parent=1 // pred_fallthru
      _
    %370 = vsyncpa [#allocation4], 1
    %371 = vsyncpa [#allocation5], 1

</llo_original>
